<compile_context>
chip_gen: v6e
topology: v6e:2x2x1
jax: 0.10.0
libtpu: 0.0.40
codegen_flags: <defaults>
</compile_context>

<pallas_src>
import functools

import jax
import jax.numpy as jnp
from jax.experimental import pallas as pl
from jax.experimental.pallas import tpu as pltpu

_LANES = 128


def _var_pool_kernel(x_ref, o_ref, *, inv_w, inv_wm1):
    # x_ref: (W, TN) tile -- W on sublanes, TN (multiple of 128) on lanes.
    # o_ref: (1, TN) tile -- lane-dense output stores.
    x = x_ref[...].astype(jnp.float32)
    mean = jnp.sum(x, axis=0, keepdims=True) * inv_w            # (1, TN)
    d = x - mean
    var = jnp.sum(d * d, axis=0, keepdims=True) * inv_wm1       # (1, TN), ddof=1
    o_ref[...] = var.astype(o_ref.dtype)


def _build_call(W, BM_pad, tn, dtype, itemsize, inv_w, inv_wm1, deep_buffering):
    grid = (BM_pad // tn,)
    in_kwargs = {}
    if deep_buffering:
        in_kwargs["pipeline_mode"] = pl.Buffered(3)
    return pl.pallas_call(
        functools.partial(_var_pool_kernel, inv_w=inv_w, inv_wm1=inv_wm1),
        out_shape=jax.ShapeDtypeStruct((1, BM_pad), dtype),
        grid=grid,
        in_specs=[pl.BlockSpec((W, tn), lambda i: (0, i), **in_kwargs)],
        out_specs=pl.BlockSpec((1, tn), lambda i: (0, i)),
        compiler_params=pltpu.CompilerParams(
            dimension_semantics=("parallel",),
            vmem_limit_bytes=32 * 1024 * 1024,
        ),
        cost_estimate=pl.CostEstimate(
            flops=3 * BM_pad * W,
            transcendentals=0,
            bytes_accessed=BM_pad * W * itemsize + BM_pad * itemsize,
        ),
    )


def stats_pooling_2d_var(x, *, max_block_lanes=None):
    """x: (B, C, H, W). Returns (B, C*H): unbiased variance over W (== torch.var dim=2)."""
    B, C, H, W = x.shape
    M = C * H
    BM = B * M
    itemsize = jnp.dtype(x.dtype).itemsize

    # Layout plumbing (lane-dense): big B*C*H axis -> lanes, reduced W axis -> sublanes.
    # Column j of xt is row (b, m) of x.reshape(B, C*H, W) with j = b*M + m.
    xt = jnp.moveaxis(x, -1, 0).reshape(W, BM)

    # Pad the lane axis to a multiple of 128 so every tile/store is dense & unmasked.
    BM_pad = -(-BM // _LANES) * _LANES
    if BM_pad != BM:
        xt = jnp.pad(xt, ((0, 0), (0, BM_pad - BM)))

    # Tile budget: keep one input buffer <= ~4 MiB so even 3-deep buffering stays
    # well under the v5e (16 MiB) / v6e,v7x (32 MiB) scoped-VMEM defaults.
    budget_bytes = 4 * 1024 * 1024
    max_tn = max(_LANES, (budget_bytes // max(1, W * itemsize)) // _LANES * _LANES)
    if max_block_lanes is not None:
        max_tn = min(max_tn, max(_LANES, (max_block_lanes // _LANES) * _LANES))
    tn = min(max_tn, BM_pad)
    while BM_pad % tn:          # keep exact division; worst case tn == 128
        tn -= _LANES
    grid_len = BM_pad // tn

    inv_w = 1.0 / float(W)
    # torch.var(unbiased=True) at W == 1 is NaN; mirror that instead of dividing by 0.
    inv_wm1 = 1.0 / float(W - 1) if W > 1 else float("nan")

    # Prefer 3-deep input buffering (hides per-step DMA latency, esp. v7x) when the
    # grid is long enough to pipeline; fall back cleanly if unsupported.
    attempts = []
    if grid_len >= 3 and hasattr(pl, "Buffered"):
        attempts.append(True)
    attempts.append(False)

    out2d = None
    last_err = None
    for deep in attempts:
        try:
            call = _build_call(W, BM_pad, tn, x.dtype, itemsize, inv_w, inv_wm1, deep)
            out2d = jax.block_until_ready(call(xt))
            break
        except Exception as e:  # fallback for Pallas builds without pipeline_mode
            last_err = e
            out2d = None
    if out2d is None:
        raise last_err

    return out2d[0, :BM].reshape(B, M)


if __name__ == "__main__":
    key = jax.random.PRNGKey(0)

    # Small shapes consistent with the module's pooling input.
    B, C, H, W = 2, 4, 16, 16
    x = jax.random.normal(key, (B, C, H, W), dtype=jnp.float32)

    out = jax.block_until_ready(stats_pooling_2d_var(x))
    ref = jnp.var(x.reshape(B, C * H, W), axis=2, ddof=1)
    assert out.shape == (B, C * H)
    assert jnp.allclose(out, ref, atol=1e-5, rtol=1e-5)

    # Second config: non-multiple-of-128 B*C*H and a forced small lane tile so the
    # multi-step grid, zero-padding and deep-buffering paths are exercised too.
    x2 = jax.random.normal(jax.random.PRNGKey(0), (5, 8, 10, 16), dtype=jnp.float32)
    out2 = jax.block_until_ready(stats_pooling_2d_var(x2, max_block_lanes=128))
    ref2 = jnp.var(x2.reshape(5, 80, 16), axis=2, ddof=1)
    assert out2.shape == (5, 80)
    assert jnp.allclose(out2, ref2, atol=1e-5, rtol=1e-5)

    print("KERNEL_OK")
</pallas_src>

<mosaic_0001>
module attributes {stable_mosaic.version = 11 : i64} {
  func.func @_var_pool_kernel(%arg0: i32, %arg1: memref<16x128xf32, #tpu.memory_space<vmem>>, %arg2: memref<1x128xf32, #tpu.memory_space<vmem>>) attributes {dimension_semantics = [#tpu.dimension_semantics<parallel>], iteration_bounds = array<i64: 1>, scalar_prefetch = 0 : i64, scratch_operands = 0 : i64, tpu.core_type = #tpu.core_type<tc>, window_params = [{transform_indices = @transform_0, window_bounds = array<i64: 16, 128>}, {transform_indices = @transform_1, window_bounds = array<i64: 1, 128>}]} {
    %c0 = arith.constant 0 : index
    %c0_0 = arith.constant 0 : index
    %0 = vector.load %arg1[%c0, %c0_0] : memref<16x128xf32, #tpu.memory_space<vmem>>, vector<16x128xf32>
    %cst = arith.constant dense<0.000000e+00> : vector<128xf32>
    %1 = vector.multi_reduction <add>, %0, %cst [0] : vector<16x128xf32> to vector<128xf32>
    %2 = vector.shape_cast %1 : vector<128xf32> to vector<1x128xf32>
    %cst_1 = arith.constant 6.250000e-02 : f32
    %3 = vector.broadcast %cst_1 : f32 to vector<1x128xf32>
    %4 = arith.mulf %2, %3 : vector<1x128xf32>
    %5 = vector.broadcast %4 : vector<1x128xf32> to vector<16x128xf32>
    %6 = arith.subf %0, %5 : vector<16x128xf32>
    %7 = arith.mulf %6, %6 : vector<16x128xf32>
    %cst_2 = arith.constant dense<0.000000e+00> : vector<128xf32>
    %8 = vector.multi_reduction <add>, %7, %cst_2 [0] : vector<16x128xf32> to vector<128xf32>
    %9 = vector.shape_cast %8 : vector<128xf32> to vector<1x128xf32>
    %cst_3 = arith.constant 0.0666666701 : f32
    %10 = vector.broadcast %cst_3 : f32 to vector<1x128xf32>
    %11 = arith.mulf %9, %10 : vector<1x128xf32>
    %c0_4 = arith.constant 0 : index
    %c0_5 = arith.constant 0 : index
    %12 = vector.load %arg2[%c0_4, %c0_5] : memref<1x128xf32, #tpu.memory_space<vmem>>, vector<1x128xf32>
    tpu.vector_store %arg2[%c0_4, %c0_5], %11 {strides = array<i32>} : memref<1x128xf32, #tpu.memory_space<vmem>>, vector<1x128xf32>,
    return
  }
  func.func @transform_0(%arg0: i32) -> (i32, i32) {
    %c0_i32 = arith.constant 0 : i32
    %c0_i32_0 = arith.constant 0 : i32
    return %c0_i32, %arg0 : i32, i32
  }
  func.func @transform_1(%arg0: i32) -> (i32, i32) {
    %c0_i32 = arith.constant 0 : i32
    %c0_i32_0 = arith.constant 0 : i32
    return %c0_i32, %arg0 : i32, i32
  }
}

</mosaic_0001>

<llo_original>
// kernel: tpu_custom_call.1
$region0: #{tpu_custom_call.1}
  #allocation0 [shape = 'u32[]', space=smem, size = 0x4, offset = 0x4, fixed_abs, tag = 'smem constant byte address 0x4 - core index']
  #allocation1 [shape = 'u32[144,128]{1,0:T(1,128)}', space=vmem, size = 0x12000, scoped, tag = 'internal scratch']
  %s0 = inlined_call_operand.hbm [shape: f32[16,128], index: 0, kind: input, shape index: {}]
  %s1 = inlined_call_operand.hbm [shape: f32[1,128], index: 1, kind: output, shape index: {}]
  %s2 = sld [smem:[#allocation0]]
  $region18: #{tpu_custom_call.1} parent=0
    _
  %s4 = ssub.s32 1, %s2
  %s5 = scalar_select 0, %s4, %s2
  $region1: #{tpu_custom_call.1} parent=0
    #allocation2 [shape = 'u8[8192]{0}', space=vmem, size = 0x2000, scoped, tag = 'input window, operand 0, single buffered']
    #allocation3 [shape = 's32[1]{0}', space=sflag, size = 0x4, scoped, tag = 'scoped memory for tpu_custom_call.1']
    #allocation4 [shape = 's32[1]{0}', space=sflag, size = 0x4, scoped, tag = 'scoped memory for tpu_custom_call.1']
    #allocation5 [shape = 'u8[512]{0}', space=vmem, size = 0x400, scoped, tag = 'output window, operand 0, single buffered']
    %6 = vsyncpa [#allocation3], 0
    %7 = vsyncpa [#allocation4], 0
    // Predicated region
    $region2: #{tpu_custom_call.1} parent=1 // pred_check
      _
    $region3: #{tpu_custom_call.1} parent=1 // pred_check_branch
      %9 = sbr.rel (0) target = $region5
    $region4: #{tpu_custom_call.1} parent=1 // pred_region
      %s11 = ssub.s32 256, 256
      %12 = vsyncadd [#allocation3], %s11
      %s13 = sshll.u32 [#allocation2], 4
      %s14 = int_to_ptr.vmem [resolvable:$true] %s13
      %19 = dma.hbm_to_vmem [thread:$0]  %s0, 256, %s14, [#allocation3], 128, 128, 8
    $region5: #{tpu_custom_call.1} parent=1 // pred_fallthru
      _
    // Predicated region
    $region6: #{tpu_custom_call.1} parent=1 // pred_check
      _
    $region7: #{tpu_custom_call.1} parent=1 // pred_check_branch
      %21 = sbr.rel (0) target = $region9
    $region8: #{tpu_custom_call.1} parent=1 // pred_region
      %22 = dma.done [#allocation3], 256
    $region9: #{tpu_custom_call.1} parent=1 // pred_fallthru
      _
    %v23 = vld [vmem:[#allocation2] sm:$0xff]
    %v24 = vld [vmem:[#allocation2 + $0x8] sm:$0xff]
    %v25 = vadd.f32 %v23, %v24
    %v26 = vrot.slane %v25, 4
    %v27 = vadd.f32 %v25, %v26
    %v28 = vrot.slane %v27, 2
    %v29 = vadd.f32 %v27, %v28
    %v30 = vrot.slane %v29, 1
    %v31 = vadd.f32 %v29, %v30
    %v32 = vmul.f32 %v31, 0.0625
    %v33 = vsub.f32 %v23, %v32
    %v34 = vsub.f32 %v24, %v32
    %v35 = vmul.f32 %v33, %v33
    %v36 = vmul.f32 %v34, %v34
    %v37 = vadd.f32 %v35, %v36
    %v38 = vrot.slane %v37, 4
    %v39 = vadd.f32 %v37, %v38
    %v40 = vrot.slane %v39, 2
    %v41 = vadd.f32 %v39, %v40
    %v42 = vrot.slane %v41, 1
    %v43 = vadd.f32 %v41, %v42
    %v44 = vmul.f32 %v43, 0.06666667
    %45 = vst [vmem:[#allocation5] sm:$0x1] %v44
    // Predicated region
    $region10: #{tpu_custom_call.1} parent=1 // pred_check
      _
    $region11: #{tpu_custom_call.1} parent=1 // pred_check_branch
      %47 = sbr.rel (0) target = $region13
    $region12: #{tpu_custom_call.1} parent=1 // pred_region
      %s49 = ssub.s32 16, 16
      %50 = vsyncadd [#allocation4], %s49
      %s52 = sshll.u32 [#allocation5], 4
      %s53 = int_to_ptr.vmem [resolvable:$true] %s52
      %55 = dma.vmem_to_hbm [thread:$0]  %s53, 16, %s1, [#allocation4]
    $region13: #{tpu_custom_call.1} parent=1 // pred_fallthru
      _
    // Predicated region
    $region14: #{tpu_custom_call.1} parent=1 // pred_check
      _
    $region15: #{tpu_custom_call.1} parent=1 // pred_check_branch
      %57 = sbr.rel (0) target = $region17
    $region16: #{tpu_custom_call.1} parent=1 // pred_region
      %58 = dma.done [#allocation4], 16
    $region17: #{tpu_custom_call.1} parent=1 // pred_fallthru
      _
    %59 = vsyncpa [#allocation3], 1
    %60 = vsyncpa [#allocation4], 1

</llo_original>
